<compile_context>
chip_gen: v7x
topology: tpu7x:2x2x1
jax: 0.10.0
libtpu: 0.0.40
codegen_flags: <defaults>
</compile_context>

<pallas_src>
import functools

import jax
import jax.numpy as jnp
from jax import lax
from jax.experimental import pallas as pl
from jax.experimental.pallas import tpu as pltpu


def _gelu(x, approximate):
    if approximate:
        # tanh form -> EUP transcendental slot (cheap under the MXU).
        c = jnp.float32(0.7978845608028654)  # sqrt(2/pi)
        return 0.5 * x * (1.0 + jnp.tanh(c * (x + 0.044715 * x * x * x)))
    # Exact erf form == torch.nn.GELU() default.
    return 0.5 * x * (1.0 + lax.erf(x * jnp.float32(0.7071067811865476)))


def _round_up(a, b):
    return ((a + b - 1) // b) * b


def _vmem_capacity_bytes():
    try:
        return int(pltpu.get_tpu_info().vmem_capacity_bytes)
    except Exception:
        return 64 << 20  # conservative fallback: v7x per-TensorCore VMEM


# ---------------------------------------------------------------------------
# Resident path: all weights fit in VMEM (single-buffered).  1-D grid over row
# tiles; the whole block (fc1 -> GELU -> fc2 -> +x -> GELU) is fused.
# ---------------------------------------------------------------------------
def _resident_kernel(x_ref, w1_ref, b1_ref, w2_ref, b2_ref, o_ref, *,
                     approximate):
    x = x_ref[...]
    h = jnp.dot(x, w1_ref[...], preferred_element_type=jnp.float32)
    h = _gelu(h + b1_ref[...].astype(jnp.float32), approximate)
    y = jnp.dot(h.astype(x.dtype), w2_ref[...],
                preferred_element_type=jnp.float32)
    y = y + b2_ref[...].astype(jnp.float32) + x.astype(jnp.float32)
    o_ref[...] = _gelu(y, approximate).astype(o_ref.dtype)


# ---------------------------------------------------------------------------
# Streamed path (large H): grid = (row tiles, hidden slabs of width tk).
#   step k:   h_k = GELU(x @ W1[:, k_slab] + b1[k_slab])      (fp32, fused)
#             acc += h_k @ W2[k_slab, :]                       (fp32 scratch)
#   last k:   out = GELU(acc + b2 + x)
# Both weights are streamed in slabs -> VMEM bounded by O((D + H) * tk).
# NOTE: correctness requires the k axis to iterate in order within a row tile
# (acc initialized at k == 0), so it must stay "arbitrary", never "parallel".
# ---------------------------------------------------------------------------
def _streamed_kernel(x_ref, w1_ref, b1_ref, w2_ref, b2_ref, o_ref, acc_ref, *,
                     approximate):
    k = pl.program_id(1)

    @pl.when(k == 0)
    def _():
        acc_ref[...] = jnp.zeros_like(acc_ref)

    x = x_ref[...]
    h = jnp.dot(x, w1_ref[...], preferred_element_type=jnp.float32)
    h = _gelu(h + b1_ref[...].astype(jnp.float32), approximate)
    acc_ref[...] += jnp.dot(h.astype(x.dtype), w2_ref[...],
                            preferred_element_type=jnp.float32)

    @pl.when(k == pl.num_programs(1) - 1)
    def _():
        y = acc_ref[...] + b2_ref[...].astype(jnp.float32) + x.astype(jnp.float32)
        o_ref[...] = _gelu(y, approximate).astype(o_ref.dtype)


@functools.partial(jax.jit, static_argnames=("tm", "tk", "approximate"))
def linear_residual_block(x, w1, b1, w2, b2, *, tm=None, tk=None,
                          approximate=False):
    """x: [M, D], w1: [D, H], b1: [H], w2: [H, H], b2: [H]. Requires D == H.

    Weights/biases are cast to x.dtype for the MXU (fp32 accumulation); feed
    bf16 activations for the fast MXU rate.  approximate=False matches
    torch.nn.GELU() exactly; approximate=True uses the cheaper tanh/EUP form.
    """
    M, D = x.shape
    H = w1.shape[1]
    assert D == H, "residual add requires input_size == hidden_size"
    assert w1.shape == (D, H) and w2.shape == (H, H)
    assert b1.shape == (H,) and b2.shape == (H,)

    cdt = x.dtype
    bpe = jnp.dtype(cdt).itemsize
    w1 = w1.astype(cdt)
    w2 = w2.astype(cdt)
    b1_2d = b1.reshape(1, H).astype(cdt)
    b2_2d = b2.reshape(1, H).astype(cdt)

    sub = 16 if cdt == jnp.bfloat16 else 8  # sublane packing

    vmem_cap = _vmem_capacity_bytes()
    budget = vmem_cap - (8 << 20)  # headroom for compiler-internal scratch

    # Row tile: 512 rows for large M; a single ragged tile for small M.
    if tm is None:
        tm = min(512, _round_up(M, sub))

    weight_bytes = (D * H + H * H + 2 * H) * bpe  # all weights, single-buffered

    def _resident_bytes(tm_):
        # x + out double-buffered, weights single-buffered, plus fp32
        # intermediates (h, y) of the fused body.
        return weight_bytes + 2 * (tm_ * D + tm_ * H) * bpe + 2 * tm_ * H * 4

    use_resident = _resident_bytes(tm) <= budget
    if not use_resident:
        # Try a smaller row tile before falling back to weight streaming.
        tm_small = max(sub, min(256, tm))
        if _resident_bytes(tm_small) <= budget:
            tm, use_resident = tm_small, True

    if use_resident:
        grid_m = pl.cdiv(M, tm)
        vmem_limit = int(min(max(_resident_bytes(tm) + (4 << 20), 32 << 20),
                             vmem_cap))
        cost = pl.CostEstimate(
            flops=2 * M * H * (D + H),
            transcendentals=2 * M * H,
            bytes_accessed=(M * D + M * H) * bpe + weight_bytes,
        )
        kernel = functools.partial(_resident_kernel, approximate=approximate)
        return pl.pallas_call(
            kernel,
            out_shape=jax.ShapeDtypeStruct((M, H), cdt),
            grid_spec=pltpu.PrefetchScalarGridSpec(
                num_scalar_prefetch=0,
                grid=(grid_m,),
                in_specs=[
                    pl.BlockSpec((tm, D), lambda i: (i, 0)),      # x row tile
                    pl.BlockSpec((D, H), lambda i: (0, 0),        # W1 resident
                                 pipeline_mode=pl.Buffered(1)),
                    pl.BlockSpec((1, H), lambda i: (0, 0),        # b1
                                 pipeline_mode=pl.Buffered(1)),
                    pl.BlockSpec((H, H), lambda i: (0, 0),        # W2 resident
                                 pipeline_mode=pl.Buffered(1)),
                    pl.BlockSpec((1, H), lambda i: (0, 0),        # b2
                                 pipeline_mode=pl.Buffered(1)),
                ],
                out_specs=pl.BlockSpec((tm, H), lambda i: (i, 0)),
            ),
            compiler_params=pltpu.CompilerParams(
                dimension_semantics=("parallel",),
                vmem_limit_bytes=vmem_limit,
            ),
            cost_estimate=cost,
        )(x, w1, b1_2d, w2, b2_2d)

    # ------------------- streamed path (very large H) ----------------------
    def _streamed_bytes(tm_, tk_):
        return (2 * (D * tk_ + tk_ + tk_ * H) * bpe   # W1/b1/W2 slabs, dbl-buf
                + H * bpe                             # b2 (single-buffered)
                + 2 * (tm_ * D + tm_ * H) * bpe       # x / out, dbl-buf
                + tm_ * H * 4                         # fp32 accumulator
                + 2 * tm_ * tk_ * 4)                  # fp32 h-slab temporaries

    if tk is None:
        tk = 512
        while tk > 128 and _streamed_bytes(tm, tk) > budget:
            tk //= 2
        while tm > 128 and _streamed_bytes(tm, tk) > budget:
            tm = max(128, _round_up(tm // 2, sub))
    assert tk % 128 == 0, "tk must be a multiple of 128 lanes"
    # TODO(synk): for extreme H where even the (tm, H) fp32 accumulator does
    # not fit in VMEM, additionally tile the fc2 output dimension (3-D grid).

    Hk = _round_up(H, tk)
    if Hk != H:
        # Zero-pad the fc1-output / fc2-reduction dim: GELU(0) == 0 and zero
        # rows of W2 contribute nothing, so results are exact.
        w1 = jnp.pad(w1, ((0, 0), (0, Hk - H)))
        b1_2d = jnp.pad(b1_2d, ((0, 0), (0, Hk - H)))
        w2 = jnp.pad(w2, ((0, Hk - H), (0, 0)))

    grid_m = pl.cdiv(M, tm)
    vmem_limit = int(min(max(_streamed_bytes(tm, tk) + (4 << 20), 32 << 20),
                         vmem_cap))
    cost = pl.CostEstimate(
        flops=2 * M * Hk * (D + H),
        transcendentals=2 * M * H,
        bytes_accessed=(M * D + M * H) * bpe
        + grid_m * (D * Hk + Hk * H + Hk + H) * bpe,  # weights per row tile
    )
    kernel = functools.partial(_streamed_kernel, approximate=approximate)
    return pl.pallas_call(
        kernel,
        out_shape=jax.ShapeDtypeStruct((M, H), cdt),
        grid_spec=pltpu.PrefetchScalarGridSpec(
            num_scalar_prefetch=0,
            grid=(grid_m, Hk // tk),
            in_specs=[
                pl.BlockSpec((tm, D), lambda i, k: (i, 0)),   # x (resident over k)
                pl.BlockSpec((D, tk), lambda i, k: (0, k)),   # W1 slab
                pl.BlockSpec((1, tk), lambda i, k: (0, k)),   # b1 slab
                pl.BlockSpec((tk, H), lambda i, k: (k, 0)),   # W2 slab
                pl.BlockSpec((1, H), lambda i, k: (0, 0),     # b2 (constant)
                             pipeline_mode=pl.Buffered(1)),
            ],
            out_specs=pl.BlockSpec((tm, H), lambda i, k: (i, 0)),
            scratch_shapes=[pltpu.VMEM((tm, H), jnp.float32)],
        ),
        compiler_params=pltpu.CompilerParams(
            dimension_semantics=("parallel", "arbitrary"),
            vmem_limit_bytes=vmem_limit,
        ),
        cost_estimate=cost,
    )(x, w1, b1_2d, w2, b2_2d)


def _reference(x, w1, b1, w2, b2):
    h = jax.nn.gelu(x @ w1 + b1, approximate=False)
    return jax.nn.gelu(h @ w2 + b2 + x, approximate=False)


if __name__ == "__main__":
    key = jax.random.PRNGKey(0)
    kx, k1, k2, k3, k4, kx2 = jax.random.split(key, 6)

    # Residual forces input_size == hidden_size.  Small shapes for the check.
    M, D = 16, 32          # M = flattened batch, D = input_size = hidden_size
    bound = 1.0 / jnp.sqrt(D)
    w1 = jax.random.uniform(k1, (D, D), minval=-bound, maxval=bound, dtype=jnp.float32)
    b1 = jax.random.uniform(k2, (D,), minval=-bound, maxval=bound, dtype=jnp.float32)
    w2 = jax.random.uniform(k3, (D, D), minval=-bound, maxval=bound, dtype=jnp.float32)
    b2 = jax.random.uniform(k4, (D,), minval=-bound, maxval=bound, dtype=jnp.float32)

    x = jax.random.normal(kx, (M, D), dtype=jnp.float32)
    out = jax.block_until_ready(linear_residual_block(x, w1, b1, w2, b2))
    ref = _reference(x, w1, b1, w2, b2)
    assert out.shape == (M, D)
    assert jnp.allclose(out, ref, atol=1e-5, rtol=1e-5), \
        f"max err {jnp.max(jnp.abs(out - ref))}"

    # Ragged row count: exercises the in-kernel boundary handling (no wrapper
    # pad / slice copies).
    M2 = 19
    x2 = jax.random.normal(kx2, (M2, D), dtype=jnp.float32)
    out2 = jax.block_until_ready(linear_residual_block(x2, w1, b1, w2, b2))
    ref2 = _reference(x2, w1, b1, w2, b2)
    assert out2.shape == (M2, D)
    assert jnp.allclose(out2, ref2, atol=1e-5, rtol=1e-5), \
        f"max err {jnp.max(jnp.abs(out2 - ref2))}"

    print("KERNEL_OK")
</pallas_src>

<mosaic_0001>
module attributes {stable_mosaic.version = 11 : i64} {
  func.func @_resident_kernel(%arg0: i32, %arg1: memref<16x32xf32, #tpu.memory_space<vmem>>, %arg2: memref<32x32xf32, #tpu.memory_space<vmem>>, %arg3: memref<1x32xf32, #tpu.memory_space<vmem>>, %arg4: memref<32x32xf32, #tpu.memory_space<vmem>>, %arg5: memref<1x32xf32, #tpu.memory_space<vmem>>, %arg6: memref<16x32xf32, #tpu.memory_space<vmem>>) attributes {dimension_semantics = [#tpu.dimension_semantics<parallel>], iteration_bounds = array<i64: 1>, scalar_prefetch = 0 : i64, scratch_operands = 0 : i64, tpu.core_type = #tpu.core_type<tc>, window_params = [{transform_indices = @transform_0, window_bounds = array<i64: 16, 32>}, {pipeline_mode = #tpu.pipeline_mode<synchronous>, transform_indices = @transform_1, window_bounds = array<i64: 32, 32>}, {pipeline_mode = #tpu.pipeline_mode<synchronous>, transform_indices = @transform_2, window_bounds = array<i64: 1, 32>}, {pipeline_mode = #tpu.pipeline_mode<synchronous>, transform_indices = @transform_3, window_bounds = array<i64: 32, 32>}, {pipeline_mode = #tpu.pipeline_mode<synchronous>, transform_indices = @transform_4, window_bounds = array<i64: 1, 32>}, {transform_indices = @transform_5, window_bounds = array<i64: 16, 32>}]} {
    %c0 = arith.constant 0 : index
    %c0_0 = arith.constant 0 : index
    %0 = vector.load %arg1[%c0, %c0_0] : memref<16x32xf32, #tpu.memory_space<vmem>>, vector<16x32xf32>
    %c0_1 = arith.constant 0 : index
    %c0_2 = arith.constant 0 : index
    %1 = vector.load %arg2[%c0_1, %c0_2] : memref<32x32xf32, #tpu.memory_space<vmem>>, vector<32x32xf32>
    %cst = arith.constant dense<0.000000e+00> : vector<16x32xf32>
    %2 = tpu.matmul %0, %1, %cst {dimension_numbers = #tpu.dot_dimension_numbers<[1], [0], [0], [1], [0, 0, 1, 1], [], []>} : vector<16x32xf32>, vector<32x32xf32>, vector<16x32xf32> -> vector<16x32xf32>
    %c0_3 = arith.constant 0 : index
    %c0_4 = arith.constant 0 : index
    %3 = vector.load %arg3[%c0_3, %c0_4] : memref<1x32xf32, #tpu.memory_space<vmem>>, vector<1x32xf32>
    %4 = vector.broadcast %3 : vector<1x32xf32> to vector<16x32xf32>
    %5 = arith.addf %2, %4 : vector<16x32xf32>
    %cst_5 = arith.constant 5.000000e-01 : f32
    %6 = vector.broadcast %cst_5 : f32 to vector<16x32xf32>
    %7 = arith.mulf %6, %5 : vector<16x32xf32>
    %cst_6 = arith.constant 0.707106769 : f32
    %8 = vector.broadcast %cst_6 : f32 to vector<16x32xf32>
    %9 = arith.mulf %5, %8 : vector<16x32xf32>
    %10 = math.erf %9 : vector<16x32xf32>
    %cst_7 = arith.constant 1.000000e+00 : f32
    %11 = vector.broadcast %cst_7 : f32 to vector<16x32xf32>
    %12 = arith.addf %11, %10 : vector<16x32xf32>
    %13 = arith.mulf %7, %12 : vector<16x32xf32>
    %c0_8 = arith.constant 0 : index
    %c0_9 = arith.constant 0 : index
    %14 = vector.load %arg4[%c0_8, %c0_9] : memref<32x32xf32, #tpu.memory_space<vmem>>, vector<32x32xf32>
    %cst_10 = arith.constant dense<0.000000e+00> : vector<16x32xf32>
    %15 = tpu.matmul %13, %14, %cst_10 {dimension_numbers = #tpu.dot_dimension_numbers<[1], [0], [0], [1], [0, 0, 1, 1], [], []>} : vector<16x32xf32>, vector<32x32xf32>, vector<16x32xf32> -> vector<16x32xf32>
    %c0_11 = arith.constant 0 : index
    %c0_12 = arith.constant 0 : index
    %16 = vector.load %arg5[%c0_11, %c0_12] : memref<1x32xf32, #tpu.memory_space<vmem>>, vector<1x32xf32>
    %17 = vector.broadcast %16 : vector<1x32xf32> to vector<16x32xf32>
    %18 = arith.addf %15, %17 : vector<16x32xf32>
    %19 = arith.addf %18, %0 : vector<16x32xf32>
    %cst_13 = arith.constant 5.000000e-01 : f32
    %20 = vector.broadcast %cst_13 : f32 to vector<16x32xf32>
    %21 = arith.mulf %20, %19 : vector<16x32xf32>
    %cst_14 = arith.constant 0.707106769 : f32
    %22 = vector.broadcast %cst_14 : f32 to vector<16x32xf32>
    %23 = arith.mulf %19, %22 : vector<16x32xf32>
    %24 = math.erf %23 : vector<16x32xf32>
    %cst_15 = arith.constant 1.000000e+00 : f32
    %25 = vector.broadcast %cst_15 : f32 to vector<16x32xf32>
    %26 = arith.addf %25, %24 : vector<16x32xf32>
    %27 = arith.mulf %21, %26 : vector<16x32xf32>
    %c0_16 = arith.constant 0 : index
    %c0_17 = arith.constant 0 : index
    %28 = vector.load %arg6[%c0_16, %c0_17] : memref<16x32xf32, #tpu.memory_space<vmem>>, vector<16x32xf32>
    tpu.vector_store %arg6[%c0_16, %c0_17], %27 {strides = array<i32>} : memref<16x32xf32, #tpu.memory_space<vmem>>, vector<16x32xf32>,
    return
  }
  func.func @transform_0(%arg0: i32) -> (i32, i32) {
    %c0_i32 = arith.constant 0 : i32
    %c0_i32_0 = arith.constant 0 : i32
    return %arg0, %c0_i32 : i32, i32
  }
  func.func @transform_1(%arg0: i32) -> (i32, i32) {
    %c0_i32 = arith.constant 0 : i32
    %c0_i32_0 = arith.constant 0 : i32
    %c0_i32_1 = arith.constant 0 : i32
    return %c0_i32, %c0_i32_0 : i32, i32
  }
  func.func @transform_2(%arg0: i32) -> (i32, i32) {
    %c0_i32 = arith.constant 0 : i32
    %c0_i32_0 = arith.constant 0 : i32
    %c0_i32_1 = arith.constant 0 : i32
    return %c0_i32, %c0_i32_0 : i32, i32
  }
  func.func @transform_3(%arg0: i32) -> (i32, i32) {
    %c0_i32 = arith.constant 0 : i32
    %c0_i32_0 = arith.constant 0 : i32
    %c0_i32_1 = arith.constant 0 : i32
    return %c0_i32, %c0_i32_0 : i32, i32
  }
  func.func @transform_4(%arg0: i32) -> (i32, i32) {
    %c0_i32 = arith.constant 0 : i32
    %c0_i32_0 = arith.constant 0 : i32
    %c0_i32_1 = arith.constant 0 : i32
    return %c0_i32, %c0_i32_0 : i32, i32
  }
  func.func @transform_5(%arg0: i32) -> (i32, i32) {
    %c0_i32 = arith.constant 0 : i32
    %c0_i32_0 = arith.constant 0 : i32
    return %arg0, %c0_i32 : i32, i32
  }
}

</mosaic_0001>

<llo_original>
// kernel: linear_residual_block.1
$region0: #{linear_residual_block.1}
  #allocation0 [shape = 'u32[]', space=smem, size = 0x4, offset = 0x4, fixed_abs, tag = 'smem constant byte address 0x4 - core index']
  #allocation1 [shape = 'u32[144,128]{1,0:T(1,128)}', space=vmem, size = 0x12000, scoped, tag = 'internal scratch']
  %s0 = inlined_call_operand.hbm [shape: f32[16,32], index: 0, kind: input, shape index: {}]
  %s1 = inlined_call_operand.hbm [shape: f32[32,32], index: 1, kind: input, shape index: {}]
  %s2 = inlined_call_operand.vmem [shape: f32[1,32], index: 2, kind: input, shape index: {}]
  %s3 = inlined_call_operand.hbm [shape: f32[32,32], index: 3, kind: input, shape index: {}]
  %s4 = inlined_call_operand.vmem [shape: f32[1,32], index: 4, kind: input, shape index: {}]
  %s5 = inlined_call_operand.hbm [shape: f32[16,32], index: 5, kind: output, shape index: {}]
  %s6 = sld [smem:[#allocation0]]
  $region42: #{linear_residual_block.1} parent=0
    _
  %s8 = ssub.s32 1, %s6
  %s9 = scalar_select 0, %s8, %s6
  $region1: #{linear_residual_block.1} parent=0
    #allocation2 [shape = 'u8[8192]{0}', space=vmem, size = 0x2000, scoped, tag = 'input window, operand 0, single buffered']
    #allocation3 [shape = 's32[1]{0}', space=sflag, size = 0x4, scoped, tag = 'scoped memory for linear_residual_block.1']
    #allocation4 [shape = 's32[1]{0}', space=sflag, size = 0x4, scoped, tag = 'scoped memory for linear_residual_block.1']
    #allocation5 [shape = 'u8[16384]{0}', space=vmem, size = 0x4000, scoped, tag = 'input window, operand 1, single buffered']
    #allocation6 [shape = 's32[1]{0}', space=sflag, size = 0x4, scoped, tag = 'scoped memory for linear_residual_block.1']
    #allocation7 [shape = 'u8[16384]{0}', space=vmem, size = 0x4000, scoped, tag = 'input window, operand 3, single buffered']
    #allocation8 [shape = 'u8[8192]{0}', space=vmem, size = 0x2000, scoped, tag = 'output window, operand 0, single buffered']
    %10 = vsyncpa [#allocation3], 0
    %11 = vsyncpa [#allocation6], 0
    %12 = vsyncpa [#allocation4], 0
    // Predicated region
    $region2: #{linear_residual_block.1} parent=1 // pred_check
      _
    $region3: #{linear_residual_block.1} parent=1 // pred_check_branch
      %14 = sbr.rel (0) target = $region5
    $region4: #{linear_residual_block.1} parent=1 // pred_region
      %s16 = ssub.s32 256, 256
      %17 = vsyncadd [#allocation3], %s16
      %s18 = sshll.u32 [#allocation2], 4
      %s19 = int_to_ptr.vmem [resolvable:$true] %s18
      %24 = dma.hbm_to_vmem [thread:$0]  %s0, 256, %s19, [#allocation3], 128, 128, 8
    $region5: #{linear_residual_block.1} parent=1 // pred_fallthru
      _
    // Predicated region
    $region6: #{linear_residual_block.1} parent=1 // pred_check
      _
    $region7: #{linear_residual_block.1} parent=1 // pred_check_branch
      %26 = sbr.rel (0) target = $region9
    $region8: #{linear_residual_block.1} parent=1 // pred_region
      %s28 = ssub.s32 512, 512
      %29 = vsyncadd [#allocation6], %s28
      %s30 = sshll.u32 [#allocation5], 4
      %s31 = int_to_ptr.vmem [resolvable:$true] %s30
      %36 = dma.hbm_to_vmem [thread:$0]  %s1, 512, %s31, [#allocation6], 128, 128, 8
    $region9: #{linear_residual_block.1} parent=1 // pred_fallthru
      _
    // Predicated region
    $region10: #{linear_residual_block.1} parent=1 // pred_check
      _
    $region11: #{linear_residual_block.1} parent=1 // pred_check_branch
      %38 = sbr.rel (0) target = $region13
    $region12: #{linear_residual_block.1} parent=1 // pred_region
      _
    $region13: #{linear_residual_block.1} parent=1 // pred_fallthru
      _
    // Predicated region
    $region14: #{linear_residual_block.1} parent=1 // pred_check
      _
    $region15: #{linear_residual_block.1} parent=1 // pred_check_branch
      %40 = sbr.rel (0) target = $region17
    $region16: #{linear_residual_block.1} parent=1 // pred_region
      %s42 = ssub.s32 512, 512
      %43 = vsyncadd [#allocation6], %s42
      %s44 = sshll.u32 [#allocation7], 4
      %s45 = int_to_ptr.vmem [resolvable:$true] %s44
      %50 = dma.hbm_to_vmem [thread:$0]  %s3, 512, %s45, [#allocation6], 128, 128, 8
    $region17: #{linear_residual_block.1} parent=1 // pred_fallthru
      _
    // Predicated region
    $region18: #{linear_residual_block.1} parent=1 // pred_check
      _
    $region19: #{linear_residual_block.1} parent=1 // pred_check_branch
      %52 = sbr.rel (0) target = $region21
    $region20: #{linear_residual_block.1} parent=1 // pred_region
      _
    $region21: #{linear_residual_block.1} parent=1 // pred_fallthru
      _
    // Predicated region
    $region22: #{linear_residual_block.1} parent=1 // pred_check
      _
    $region23: #{linear_residual_block.1} parent=1 // pred_check_branch
      %54 = sbr.rel (0) target = $region25
    $region24: #{linear_residual_block.1} parent=1 // pred_region
      %55 = dma.done [#allocation3], 256
    $region25: #{linear_residual_block.1} parent=1 // pred_fallthru
      _
    // Predicated region
    $region26: #{linear_residual_block.1} parent=1 // pred_check
      _
    $region27: #{linear_residual_block.1} parent=1 // pred_check_branch
      %57 = sbr.rel (0) target = $region29
    $region28: #{linear_residual_block.1} parent=1 // pred_region
      %58 = dma.done [#allocation6], 512
    $region29: #{linear_residual_block.1} parent=1 // pred_fallthru
      _
    // Predicated region
    $region30: #{linear_residual_block.1} parent=1 // pred_check
      _
    $region31: #{linear_residual_block.1} parent=1 // pred_check_branch
      %60 = sbr.rel (0) target = $region33
    $region32: #{linear_residual_block.1} parent=1 // pred_region
      %61 = dma.done [#allocation6], 512
    $region33: #{linear_residual_block.1} parent=1 // pred_fallthru
      _
    %v62 = vld [vmem:[#allocation2] sm:$0xff]
    %v63 = vld [vmem:[#allocation2 + $0x8] sm:$0xff]
    %v64 = vld [vmem:[#allocation5] sm:$0xff]
    %v65 = vld [vmem:[#allocation5 + $0x8] sm:$0xff]
    %v66 = vld [vmem:[#allocation5 + $0x10] sm:$0xff]
    %v67 = vld [vmem:[#allocation5 + $0x18] sm:$0xff]
    %v68 = vld [vmem:[%s2] sm:$0x1]
    %v70 = vlaneseq
    %v71 = vshrl.u32 %v70, 7
    %v72 = vsub.s32 0, %v71
    %v73 = vrot.slane %v68, %v72
    %vm75 = vcmask 261120
    %v77 = vsel %vm75, %v62, 0
    %v80 = vsel %vm75, %v63, 0
    %82 = vmatprep.subr.mxu0 0.0
    %83 = vmatpush1.msra.mxu0 %v64
    %84 = vmatprep.subr.mxu0 0.0
    %85 = vmatpush1.msra.mxu0 %v65
    %86 = vmatprep.subr.mxu0 0.0
    %87 = vmatpush1.msra.mxu0 %v66
    %88 = vmatprep.subr.mxu0 0.0
    %89 = vmatpush1.msra.mxu0 %v67
    %90 = vmatprep.subr.mxu0 0.0
    %91 = vmatpush1.msra.mxu0 0.0
    %92 = vmatprep.subr.mxu0 0.0
    %93 = vmatpush1.msra.mxu0 0.0
    %94 = vmatprep.subr.mxu0 0.0
    %95 = vmatpush1.msra.mxu0 0.0
    %96 = vmatprep.subr.mxu0 0.0
    %97 = vmatpush1.msra.mxu0 0.0
    %98 = vmatprep.subr.mxu0 0.0
    %99 = vmatpush1.msra.mxu0 0.0
    %100 = vmatprep.subr.mxu0 0.0
    %101 = vmatpush1.msra.mxu0 0.0
    %102 = vmatprep.subr.mxu0 0.0
    %103 = vmatpush1.msra.mxu0 0.0
    %104 = vmatprep.subr.mxu0 0.0
    %105 = vmatpush1.msra.mxu0 0.0
    %106 = vmatprep.subr.mxu0 0.0
    %107 = vmatpush1.msra.mxu0 0.0
    %108 = vmatprep.subr.mxu0 0.0
    %109 = vmatpush1.msra.mxu0 0.0
    %110 = vmatprep.subr.mxu0 0.0
    %111 = vmatpush1.msra.mxu0 0.0
    %112 = vmatprep.subr.mxu0 0.0
    %113 = vmatpush1.msra.mxu0 0.0
    %114 = vmatprep.subr.mxu0 0.0
    %115 = vmatpush1.msra.mxu0 0.0
    %116 = vmatprep.subr.mxu0 0.0
    %117 = vmatpush1.msra.mxu0 0.0
    %118 = vmatprep.subr.mxu0 0.0
    %119 = vmatpush1.msra.mxu0 0.0
    %120 = vmatprep.subr.mxu0 0.0
    %121 = vmatpush1.msra.mxu0 0.0
    %122 = vmatprep.subr.mxu0 0.0
    %123 = vmatpush1.msra.mxu0 0.0
    %124 = vmatprep.subr.mxu0 0.0
    %125 = vmatpush1.msra.mxu0 0.0
    %126 = vmatprep.subr.mxu0 0.0
    %127 = vmatpush1.msra.mxu0 0.0
    %128 = vmatprep.subr.mxu0 0.0
    %129 = vmatpush1.msra.mxu0 0.0
    %130 = vmatprep.subr.mxu0 0.0
    %131 = vmatpush1.msra.mxu0 0.0
    %132 = vmatprep.subr.mxu0 0.0
    %133 = vmatpush1.msra.mxu0 0.0
    %134 = vmatprep.subr.mxu0 0.0
    %135 = vmatpush1.msra.mxu0 0.0
    %136 = vmatprep.subr.mxu0 0.0
    %137 = vmatpush1.msra.mxu0 0.0
    %138 = vmatprep.subr.mxu0 0.0
    %139 = vmatpush1.msra.mxu0 0.0
    %140 = vmatprep.subr.mxu0 0.0
    %141 = vmatpush1.msra.mxu0 0.0
    %142 = vmatprep.subr.mxu0 0.0
    %143 = vmatpush1.msra.mxu0 0.0
    %144 = vmatprep.subr.mxu0 0.0
    %145 = vmatpush1.msra.mxu0 0.0
    %146 = vmatprep.mubr.f32.mxu0 0.0
    %147 = vmatmul.mubr.f32.gmra.mrb[0].mxu0 %v77
    %v148 = vpop.f32.mrb[0].mxu0
    %v149 = vadd.f32 %v73, %v148
    %v150 = vpop.f32.mrb[0].mxu0
    %151 = vmatprep.mubr.f32.mxu0 0.0
    %152 = vmatmul.mubr.f32.gmra.mrb[0].mxu0 %v80
    %v153 = vpop.f32.mrb[0].mxu0
    %v154 = vadd.f32 %v73, %v153
    %v155 = vpop.f32.mrb[0].mxu0
    %156 = vdwg.mxu0
    %v157 = vmul.f32 %v149, 0.5
    %v158 = vmul.f32 %v154, 0.5
    %v159 = vmul.f32 %v149, 0.70710677
    %v160 = vmul.f32 %v154, 0.70710677
    %v161 = verf.f32.pop %v159
    %v162 = verf.f32.pop %v160
    %v163 = vadd.f32 %v161, 1.0
    %v164 = vadd.f32 %v162, 1.0
    %v165 = vmul.f32 %v157, %v163
    %v166 = vmul.f32 %v158, %v164
    %v167 = vld [vmem:[#allocation7] sm:$0xff]
    %v168 = vld [vmem:[#allocation7 + $0x8] sm:$0xff]
    %v169 = vld [vmem:[#allocation7 + $0x10] sm:$0xff]
    %v170 = vld [vmem:[#allocation7 + $0x18] sm:$0xff]
    %v171 = vld [vmem:[%s4] sm:$0x1]
    %v173 = vlaneseq
    %v174 = vshrl.u32 %v173, 7
    %v175 = vsub.s32 0, %v174
    %v176 = vrot.slane %v171, %v175
    %v179 = vsel %vm75, %v165, 0
    %v182 = vsel %vm75, %v166, 0
    %184 = vmatprep.subr.mxu0 0.0
    %185 = vmatpush1.msra.mxu0 %v167
    %186 = vmatprep.subr.mxu0 0.0
    %187 = vmatpush1.msra.mxu0 %v168
    %188 = vmatprep.subr.mxu0 0.0
    %189 = vmatpush1.msra.mxu0 %v169
    %190 = vmatprep.subr.mxu0 0.0
    %191 = vmatpush1.msra.mxu0 %v170
    %192 = vmatprep.subr.mxu0 0.0
    %193 = vmatpush1.msra.mxu0 0.0
    %194 = vmatprep.subr.mxu0 0.0
    %195 = vmatpush1.msra.mxu0 0.0
    %196 = vmatprep.subr.mxu0 0.0
    %197 = vmatpush1.msra.mxu0 0.0
    %198 = vmatprep.subr.mxu0 0.0
    %199 = vmatpush1.msra.mxu0 0.0
    %200 = vmatprep.subr.mxu0 0.0
    %201 = vmatpush1.msra.mxu0 0.0
    %202 = vmatprep.subr.mxu0 0.0
    %203 = vmatpush1.msra.mxu0 0.0
    %204 = vmatprep.subr.mxu0 0.0
    %205 = vmatpush1.msra.mxu0 0.0
    %206 = vmatprep.subr.mxu0 0.0
    %207 = vmatpush1.msra.mxu0 0.0
    %208 = vmatprep.subr.mxu0 0.0
    %209 = vmatpush1.msra.mxu0 0.0
    %210 = vmatprep.subr.mxu0 0.0
    %211 = vmatpush1.msra.mxu0 0.0
    %212 = vmatprep.subr.mxu0 0.0
    %213 = vmatpush1.msra.mxu0 0.0
    %214 = vmatprep.subr.mxu0 0.0
    %215 = vmatpush1.msra.mxu0 0.0
    %216 = vmatprep.subr.mxu0 0.0
    %217 = vmatpush1.msra.mxu0 0.0
    %218 = vmatprep.subr.mxu0 0.0
    %219 = vmatpush1.msra.mxu0 0.0
    %220 = vmatprep.subr.mxu0 0.0
    %221 = vmatpush1.msra.mxu0 0.0
    %222 = vmatprep.subr.mxu0 0.0
    %223 = vmatpush1.msra.mxu0 0.0
    %224 = vmatprep.subr.mxu0 0.0
    %225 = vmatpush1.msra.mxu0 0.0
    %226 = vmatprep.subr.mxu0 0.0
    %227 = vmatpush1.msra.mxu0 0.0
    %228 = vmatprep.subr.mxu0 0.0
    %229 = vmatpush1.msra.mxu0 0.0
    %230 = vmatprep.subr.mxu0 0.0
    %231 = vmatpush1.msra.mxu0 0.0
    %232 = vmatprep.subr.mxu0 0.0
    %233 = vmatpush1.msra.mxu0 0.0
    %234 = vmatprep.subr.mxu0 0.0
    %235 = vmatpush1.msra.mxu0 0.0
    %236 = vmatprep.subr.mxu0 0.0
    %237 = vmatpush1.msra.mxu0 0.0
    %238 = vmatprep.subr.mxu0 0.0
    %239 = vmatpush1.msra.mxu0 0.0
    %240 = vmatprep.subr.mxu0 0.0
    %241 = vmatpush1.msra.mxu0 0.0
    %242 = vmatprep.subr.mxu0 0.0
    %243 = vmatpush1.msra.mxu0 0.0
    %244 = vmatprep.subr.mxu0 0.0
    %245 = vmatpush1.msra.mxu0 0.0
    %246 = vmatprep.subr.mxu0 0.0
    %247 = vmatpush1.msra.mxu0 0.0
    %248 = vmatprep.mubr.f32.mxu0 0.0
    %249 = vmatmul.mubr.f32.gmra.mrb[0].mxu0 %v179
    %v250 = vpop.f32.mrb[0].mxu0
    %v251 = vadd.f32 %v176, %v250
    %v252 = vpop.f32.mrb[0].mxu0
    %253 = vmatprep.mubr.f32.mxu0 0.0
    %254 = vmatmul.mubr.f32.gmra.mrb[0].mxu0 %v182
    %v255 = vpop.f32.mrb[0].mxu0
    %v256 = vadd.f32 %v176, %v255
    %v257 = vpop.f32.mrb[0].mxu0
    %258 = vdwg.mxu0
    %v259 = vadd.f32 %v251, %v62
    %v260 = vadd.f32 %v256, %v63
    %v261 = vmul.f32 %v259, 0.5
    %v262 = vmul.f32 %v260, 0.5
    %v263 = vmul.f32 %v259, 0.70710677
    %v264 = vmul.f32 %v260, 0.70710677
    %v265 = verf.f32.pop %v263
    %v266 = verf.f32.pop %v264
    %v267 = vadd.f32 %v265, 1.0
    %v268 = vadd.f32 %v266, 1.0
    %v269 = vmul.f32 %v261, %v267
    %v270 = vmul.f32 %v262, %v268
    %271 = vst.msk [vmem:[#allocation8] sm:$0xff] %vm75, %v269
    %272 = vst.msk [vmem:[#allocation8 + $0x8] sm:$0xff] %vm75, %v270
    // Predicated region
    $region34: #{linear_residual_block.1} parent=1 // pred_check
      _
    $region35: #{linear_residual_block.1} parent=1 // pred_check_branch
      %274 = sbr.rel (0) target = $region37
    $region36: #{linear_residual_block.1} parent=1 // pred_region
      %s276 = ssub.s32 256, 256
      %277 = vsyncadd [#allocation4], %s276
      %s278 = sshll.u32 [#allocation8], 4
      %s279 = int_to_ptr.vmem [resolvable:$true] %s278
      %284 = dma.vmem_to_hbm [thread:$0]  %s279, 256, %s5, [#allocation4], 128, 128, 8
    $region37: #{linear_residual_block.1} parent=1 // pred_fallthru
      _
    // Predicated region
    $region38: #{linear_residual_block.1} parent=1 // pred_check
      _
    $region39: #{linear_residual_block.1} parent=1 // pred_check_branch
      %286 = sbr.rel (0) target = $region41
    $region40: #{linear_residual_block.1} parent=1 // pred_region
      %287 = dma.done [#allocation4], 256
    $region41: #{linear_residual_block.1} parent=1 // pred_fallthru
      _
    %288 = vsyncpa [#allocation3], 1
    %289 = vsyncpa [#allocation6], 1
    %290 = vsyncpa [#allocation4], 1

</llo_original>
